<compile_context>
chip_gen: v6e
topology: v6e:2x2x1
jax: 0.10.0
libtpu: 0.0.40
codegen_flags: <defaults>
</compile_context>

<pallas_src>
import functools

import jax
import jax.numpy as jnp
from jax.experimental import pallas as pl
from jax.experimental.pallas import tpu as pltpu

_EPS = 1e-6  # F.pairwise_distance default eps


def _round_up(x, m):
    return ((x + m - 1) // m) * m


def _contrastive_loss_kernel(x1_ref, x2_ref, lab_ref, out_ref, acc_ref, *,
                             margin, batch, tile_rows, tiles_per_split):
    c = pl.program_id(0)   # batch-split index ("parallel": one per TC on v7x)
    j = pl.program_id(1)   # streaming tile index within the split ("arbitrary")

    @pl.when(j == 0)
    def _init():
        acc_ref[...] = jnp.zeros_like(acc_ref)

    # Inputs stay in their native dtype (bf16/f32) in HBM; cast to f32 here.
    x1 = x1_ref[...].astype(jnp.float32)
    x2 = x2_ref[...].astype(jnp.float32)
    diff = x1 - x2 + _EPS                                   # eps matches F.pairwise_distance
    d2 = jnp.sum(diff * diff, axis=-1, keepdims=True)       # (TB, 1)

    # Logical (unclamped) tile index -> global row ids.  Mask ragged/duplicated
    # rows BEFORE the sqrt so no NaN/Inf enters the live values.
    t = c * tiles_per_split + j
    row = t * tile_rows + jax.lax.broadcasted_iota(jnp.int32, d2.shape, 0)
    valid = row < batch
    d2 = jnp.where(valid, d2, 0.0)
    lab = jnp.where(valid, lab_ref[...].astype(jnp.float32), 0.0)

    d = jnp.sqrt(d2)
    hinge = jnp.maximum(jnp.float32(margin) - d, 0.0)
    per_sample = (1.0 - lab) * d2 + lab * (hinge * hinge)   # == 0 on masked rows

    # Deferred reduction: plain VPU add per step (hides under DMA slack); the
    # cross-sublane reduce runs once per split, in the finalize branch.
    acc_ref[...] += per_sample

    @pl.when(j == pl.num_programs(1) - 1)
    def _finalize():
        partial = jnp.sum(acc_ref[...])
        # Lane-dense unmasked store of this split's partial sum.
        out_ref[...] = jnp.full(out_ref.shape, partial, dtype=jnp.float32)


def _choose_tile_rows(batch, feat, itemsize):
    """Rows per streaming tile.

    Sized so that (a) each grid step moves >= ~2 MiB of HBM per feature input
    (per-step DMA dwarfs the ~0.35us fixed step overhead on every generation)
    and (b) the *padded* VMEM working set — feature dim rounded up to 128
    lanes, 2 inputs x 2 pipeline buffers, plus label buffers and the f32
    accumulator — stays <= ~22 MiB, which fits v7x's 32 MiB scoped-VMEM
    default as well as v5e/v6e.
    """
    sublane = {4: 8, 2: 16, 1: 32}.get(itemsize, 8)
    feat_lanes = _round_up(feat, 128)

    row_hbm = feat * itemsize                               # HBM bytes / row / input
    row_vmem = 4 * feat_lanes * itemsize + 3 * 128 * 4      # padded VMEM bytes / row

    tb_hbm = (2 * 1024 * 1024) // max(row_hbm, 1)
    tb_vmem = (22 * 1024 * 1024) // max(row_vmem, 1)
    tb = max(sublane, min(tb_hbm, tb_vmem))
    tb -= tb % sublane
    if tb >= batch:
        return batch
    return tb
    # TODO(synk): for extremely wide feature dims (padded row > ~3 MiB) the
    # feature axis itself should be tiled; not needed for this module (D=30).


def contrastive_loss(output1, output2, label, margin=1.0, tile_rows=None,
                     use_pallas=None):
    """output1, output2: (B, D); label: (B,). Returns scalar f32 loss."""
    B, D = output1.shape
    itemsize = jnp.dtype(output1.dtype).itemsize

    # Small-problem fallback: below ~1 MiB of feature data the kernel is pure
    # launch/DMA-setup latency; XLA fuses the same math inline for free.
    if use_pallas is None:
        use_pallas = 2 * B * D * itemsize >= (1 << 20)
    if not use_pallas:
        return _reference_loss(output1, output2, label, margin)

    label2d = label.reshape(B, 1).astype(jnp.float32)
    if tile_rows is None:
        tile_rows = _choose_tile_rows(B, D, itemsize)

    total_tiles = pl.cdiv(B, tile_rows)
    # Split the batch across TensorCores: "parallel" axis of size 2 lets v7x
    # use both TCs (~2x HBM BW); on 1-TC parts it just runs sequentially.
    num_splits = 2 if total_tiles >= 2 else 1
    tiles_per_split = pl.cdiv(total_tiles, num_splits)
    grid = (num_splits, tiles_per_split)

    def _tile_index(c, j):
        # Clamp so the last split never addresses a fully out-of-range block;
        # the re-read rows are masked out in-kernel and contribute zero.
        return jnp.minimum(c * tiles_per_split + j, total_tiles - 1)

    kernel = functools.partial(
        _contrastive_loss_kernel, margin=float(margin), batch=B,
        tile_rows=tile_rows, tiles_per_split=tiles_per_split)

    # Padded VMEM working-set accounting -> scoped VMEM limit (capped at v7x's
    # 64 MiB physical so a user-forced tile can't compile for 128 MiB parts
    # only).
    sublane = {4: 8, 2: 16, 1: 32}.get(itemsize, 8)
    feat_lanes = _round_up(D, 128)
    tr_pad = _round_up(tile_rows, sublane)
    working_set = (4 * tr_pad * feat_lanes * itemsize      # 2 inputs x 2 buffers
                   + 2 * _round_up(tile_rows, 8) * 128 * 4  # label x 2 buffers
                   + _round_up(tile_rows, 8) * 128 * 4      # f32 accumulator
                   + 2 * 8 * 128 * 4)                       # output blocks
    vmem_limit = int(max(min(working_set + (4 << 20), 64 << 20), 16 << 20))

    cost = pl.CostEstimate(
        flops=B * (4 * D + 8),
        transcendentals=B,
        bytes_accessed=2 * B * D * itemsize + B * 4 + num_splits * 8 * 128 * 4)

    out = pl.pallas_call(
        kernel,
        out_shape=jax.ShapeDtypeStruct((num_splits, 8, 128), jnp.float32),
        grid=grid,
        in_specs=[
            pl.BlockSpec((tile_rows, D), lambda c, j: (_tile_index(c, j), 0)),
            pl.BlockSpec((tile_rows, D), lambda c, j: (_tile_index(c, j), 0)),
            pl.BlockSpec((tile_rows, 1), lambda c, j: (_tile_index(c, j), 0)),
        ],
        out_specs=pl.BlockSpec((1, 8, 128), lambda c, j: (c, 0, 0)),
        scratch_shapes=[pltpu.VMEM((tile_rows, 1), jnp.float32)],
        compiler_params=pltpu.CompilerParams(
            dimension_semantics=("parallel", "arbitrary"),
            vmem_limit_bytes=vmem_limit),
        cost_estimate=cost,
    )(output1, output2, label2d)

    # Combine the per-split partial sums and take the mean over the true batch.
    return jnp.sum(out[:, 0, 0]) / jnp.float32(B)


def _reference_loss(output1, output2, label, margin=1.0):
    # Pure-JAX reference mirroring the PyTorch module (also used as the
    # small-problem fallback).
    diff = output1.astype(jnp.float32) - output2.astype(jnp.float32) + _EPS
    d = jnp.sqrt(jnp.sum(diff * diff, axis=-1))
    lab = label.astype(jnp.float32)
    return jnp.mean((1.0 - lab) * d ** 2
                    + lab * jnp.maximum(margin - d, 0.0) ** 2)


if __name__ == "__main__":
    key = jax.random.PRNGKey(0)
    k1, k2, k3, k4, k5, k6, k7, k8, k9 = jax.random.split(key, 9)
    margin = 1.0  # parameters['margin']

    # Case 1: module's native shapes (train_batch_size=128 pairs, end_dim=30),
    # f32.  Force the Pallas path (the wrapper would otherwise take the fused
    # pure-JAX fallback for a problem this small).
    B, D = 128, 30
    o1 = jax.random.normal(k1, (B, D), dtype=jnp.float32)
    o2 = jax.random.normal(k2, (B, D), dtype=jnp.float32)
    lab = jax.random.bernoulli(k3, 0.5, (B,)).astype(jnp.float32)
    loss = jax.block_until_ready(
        contrastive_loss(o1, o2, lab, margin=margin, use_pallas=True))
    ref = _reference_loss(o1, o2, lab, margin=margin)
    assert jnp.allclose(loss, ref, atol=1e-5, rtol=1e-5), (loss, ref)

    # Case 2: bf16 inputs (halved DMA traffic), forced small tile so the grid
    # exercises the 2-way batch split, multi-step accumulation and a ragged,
    # masked last tile (B=100, TB=32 -> grid (2, 2)).
    B2, D2 = 100, 30
    p1 = jax.random.normal(k4, (B2, D2), dtype=jnp.bfloat16)
    p2 = jax.random.normal(k5, (B2, D2), dtype=jnp.bfloat16)
    lab2 = jax.random.bernoulli(k6, 0.5, (B2,)).astype(jnp.float32)
    loss2 = jax.block_until_ready(
        contrastive_loss(p1, p2, lab2, margin=margin, tile_rows=32,
                         use_pallas=True))
    ref2 = _reference_loss(p1, p2, lab2, margin=margin)
    assert jnp.allclose(loss2, ref2, atol=1e-4, rtol=1e-4), (loss2, ref2)

    # Case 3: odd tile count (T=5 with TB=48) -> the second split's last tile
    # index is clamped and fully masked; exercises the out-of-range guard.
    B3, D3 = 200, 30
    q1 = jax.random.normal(k7, (B3, D3), dtype=jnp.float32)
    q2 = jax.random.normal(k8, (B3, D3), dtype=jnp.float32)
    lab3 = jax.random.bernoulli(k9, 0.5, (B3,)).astype(jnp.float32)
    loss3 = jax.block_until_ready(
        contrastive_loss(q1, q2, lab3, margin=margin, tile_rows=48,
                         use_pallas=True))
    ref3 = _reference_loss(q1, q2, lab3, margin=margin)
    assert jnp.allclose(loss3, ref3, atol=1e-5, rtol=1e-5), (loss3, ref3)

    print("KERNEL_OK")
</pallas_src>

<mosaic_0001>
module attributes {stable_mosaic.version = 11 : i64} {
  func.func @_contrastive_loss_kernel(%arg0: i32, %arg1: i32, %arg2: memref<128x30xf32, #tpu.memory_space<vmem>>, %arg3: memref<128x30xf32, #tpu.memory_space<vmem>>, %arg4: memref<128x1xf32, #tpu.memory_space<vmem>>, %arg5: memref<1x8x128xf32, #tpu.memory_space<vmem>>, %arg6: memref<128x1xf32, #tpu.memory_space<vmem>>) attributes {dimension_semantics = [#tpu.dimension_semantics<parallel>, #tpu.dimension_semantics<arbitrary>], iteration_bounds = array<i64: 1, 1>, scalar_prefetch = 0 : i64, scratch_operands = 1 : i64, tpu.core_type = #tpu.core_type<tc>, window_params = [{transform_indices = @transform_0, window_bounds = array<i64: 128, 30>}, {transform_indices = @transform_1, window_bounds = array<i64: 128, 30>}, {transform_indices = @transform_2, window_bounds = array<i64: 128, 1>}, {transform_indices = @transform_3, window_bounds = array<i64: 1, 8, 128>}]} {
    %c0_i32 = arith.constant 0 : i32
    %0 = arith.cmpi eq, %arg1, %c0_i32 : i32
    %1 = arith.extui %0 : i1 to i32
    %c0_i32_0 = arith.constant 0 : i32
    %2 = arith.cmpi ne, %1, %c0_i32_0 : i32
    scf.if %2 {
      %cst_19 = arith.constant 0.000000e+00 : f32
      %41 = vector.broadcast %cst_19 : f32 to vector<128x1xf32>
      %c0_20 = arith.constant 0 : index
      %c0_21 = arith.constant 0 : index
      %42 = vector.load %arg6[%c0_20, %c0_21] : memref<128x1xf32, #tpu.memory_space<vmem>>, vector<128x1xf32>
      tpu.vector_store %arg6[%c0_20, %c0_21], %41 {strides = array<i32>} : memref<128x1xf32, #tpu.memory_space<vmem>>, vector<128x1xf32>,
    } else {
    }
    %c0 = arith.constant 0 : index
    %c0_1 = arith.constant 0 : index
    %3 = vector.load %arg2[%c0, %c0_1] : memref<128x30xf32, #tpu.memory_space<vmem>>, vector<128x30xf32>
    %c0_2 = arith.constant 0 : index
    %c0_3 = arith.constant 0 : index
    %4 = vector.load %arg3[%c0_2, %c0_3] : memref<128x30xf32, #tpu.memory_space<vmem>>, vector<128x30xf32>
    %5 = arith.subf %3, %4 : vector<128x30xf32>
    %cst = arith.constant 9.99999997E-7 : f32
    %6 = vector.broadcast %cst : f32 to vector<128x30xf32>
    %7 = arith.addf %5, %6 : vector<128x30xf32>
    %8 = arith.mulf %7, %7 : vector<128x30xf32>
    %cst_4 = arith.constant dense<0.000000e+00> : vector<128xf32>
    %9 = vector.multi_reduction <add>, %8, %cst_4 [1] : vector<128x30xf32> to vector<128xf32>
    %10 = vector.shape_cast %9 : vector<128xf32> to vector<128x1xf32>
    %c1_i32 = arith.constant 1 : i32
    %11 = arith.muli %arg0, %c1_i32 : i32
    %12 = arith.addi %11, %arg1 : i32
    %c128_i32 = arith.constant 128 : i32
    %13 = arith.muli %12, %c128_i32 : i32
    %14 = tpu.iota {dimensions = array<i32: 0>} : vector<128x1xi32>
    %15 = vector.broadcast %13 : i32 to vector<128x1xi32>
    %16 = arith.addi %15, %14 : vector<128x1xi32>
    %c128_i32_5 = arith.constant 128 : i32
    %17 = vector.broadcast %c128_i32_5 : i32 to vector<128x1xi32>
    %18 = arith.cmpi slt, %16, %17 : vector<128x1xi32>
    %cst_6 = arith.constant 0.000000e+00 : f32
    %19 = vector.broadcast %cst_6 : f32 to vector<128x1xf32>
    %20 = arith.select %18, %10, %19 : vector<128x1xi1>, vector<128x1xf32>
    %c0_7 = arith.constant 0 : index
    %c0_8 = arith.constant 0 : index
    %21 = vector.load %arg4[%c0_7, %c0_8] : memref<128x1xf32, #tpu.memory_space<vmem>>, vector<128x1xf32>
    %cst_9 = arith.constant 0.000000e+00 : f32
    %22 = vector.broadcast %cst_9 : f32 to vector<128x1xf32>
    %23 = arith.select %18, %21, %22 : vector<128x1xi1>, vector<128x1xf32>
    %24 = math.sqrt %20 : vector<128x1xf32>
    %cst_10 = arith.constant 1.000000e+00 : f32
    %25 = vector.broadcast %cst_10 : f32 to vector<128x1xf32>
    %26 = arith.subf %25, %24 : vector<128x1xf32>
    %cst_11 = arith.constant 0.000000e+00 : f32
    %27 = vector.broadcast %cst_11 : f32 to vector<128x1xf32>
    %28 = arith.maximumf %26, %27 : vector<128x1xf32>
    %cst_12 = arith.constant 1.000000e+00 : f32
    %29 = vector.broadcast %cst_12 : f32 to vector<128x1xf32>
    %30 = arith.subf %29, %23 : vector<128x1xf32>
    %31 = arith.mulf %30, %20 : vector<128x1xf32>
    %32 = arith.mulf %28, %28 : vector<128x1xf32>
    %33 = arith.mulf %23, %32 : vector<128x1xf32>
    %34 = arith.addf %31, %33 : vector<128x1xf32>
    %c0_13 = arith.constant 0 : index
    %c0_14 = arith.constant 0 : index
    %35 = vector.load %arg6[%c0_13, %c0_14] : memref<128x1xf32, #tpu.memory_space<vmem>>, vector<128x1xf32>
    %36 = arith.addf %35, %34 : vector<128x1xf32>
    %c0_15 = arith.constant 0 : index
    %c0_16 = arith.constant 0 : index
    %37 = vector.load %arg6[%c0_15, %c0_16] : memref<128x1xf32, #tpu.memory_space<vmem>>, vector<128x1xf32>
    tpu.vector_store %arg6[%c0_15, %c0_16], %36 {strides = array<i32>} : memref<128x1xf32, #tpu.memory_space<vmem>>, vector<128x1xf32>,
    %c0_i32_17 = arith.constant 0 : i32
    %38 = arith.cmpi eq, %arg1, %c0_i32_17 : i32
    %39 = arith.extui %38 : i1 to i32
    %c0_i32_18 = arith.constant 0 : i32
    %40 = arith.cmpi ne, %39, %c0_i32_18 : i32
    scf.if %40 {
      %c0_19 = arith.constant 0 : index
      %c0_20 = arith.constant 0 : index
      %41 = vector.load %arg6[%c0_19, %c0_20] : memref<128x1xf32, #tpu.memory_space<vmem>>, vector<128x1xf32>
      %42 = vector.shape_cast %41 : vector<128x1xf32> to vector<1x128x1xf32>
      %cst_21 = arith.constant dense<0.000000e+00> : vector<1xf32>
      %43 = vector.multi_reduction <add>, %42, %cst_21 [1, 2] : vector<1x128x1xf32> to vector<1xf32>
      %44 = vector.shape_cast %43 : vector<1xf32> to vector<1x1x1xf32>
      %45 = vector.extract %44[0, 0, 0] : f32 from vector<1x1x1xf32>
      %46 = vector.broadcast %45 : f32 to vector<1x8x128xf32>
      %c0_22 = arith.constant 0 : index
      %c0_23 = arith.constant 0 : index
      %c0_24 = arith.constant 0 : index
      %47 = vector.load %arg5[%c0_22, %c0_23, %c0_24] : memref<1x8x128xf32, #tpu.memory_space<vmem>>, vector<1x8x128xf32>
      tpu.vector_store %arg5[%c0_22, %c0_23, %c0_24], %46 {strides = array<i32>} : memref<1x8x128xf32, #tpu.memory_space<vmem>>, vector<1x8x128xf32>,
    } else {
    }
    return
  }
  func.func @transform_0(%arg0: i32, %arg1: i32) -> (i32, i32) {
    %c1_i32 = arith.constant 1 : i32
    %0 = arith.muli %arg0, %c1_i32 : i32
    %1 = arith.addi %0, %arg1 : i32
    %c0_i32 = arith.constant 0 : i32
    %2 = arith.minsi %1, %c0_i32 : i32
    %c0_i32_0 = arith.constant 0 : i32
    %c0_i32_1 = arith.constant 0 : i32
    return %2, %c0_i32_0 : i32, i32
  }
  func.func @transform_1(%arg0: i32, %arg1: i32) -> (i32, i32) {
    %c1_i32 = arith.constant 1 : i32
    %0 = arith.muli %arg0, %c1_i32 : i32
    %1 = arith.addi %0, %arg1 : i32
    %c0_i32 = arith.constant 0 : i32
    %2 = arith.minsi %1, %c0_i32 : i32
    %c0_i32_0 = arith.constant 0 : i32
    %c0_i32_1 = arith.constant 0 : i32
    return %2, %c0_i32_0 : i32, i32
  }
  func.func @transform_2(%arg0: i32, %arg1: i32) -> (i32, i32) {
    %c1_i32 = arith.constant 1 : i32
    %0 = arith.muli %arg0, %c1_i32 : i32
    %1 = arith.addi %0, %arg1 : i32
    %c0_i32 = arith.constant 0 : i32
    %2 = arith.minsi %1, %c0_i32 : i32
    %c0_i32_0 = arith.constant 0 : i32
    %c0_i32_1 = arith.constant 0 : i32
    return %2, %c0_i32_0 : i32, i32
  }
  func.func @transform_3(%arg0: i32, %arg1: i32) -> (i32, i32, i32) {
    %c0_i32 = arith.constant 0 : i32
    %c0_i32_0 = arith.constant 0 : i32
    %c0_i32_1 = arith.constant 0 : i32
    return %arg0, %c0_i32, %c0_i32_0 : i32, i32, i32
  }
}

</mosaic_0001>

<llo_original>
// kernel: tpu_custom_call.1
$region0: #{tpu_custom_call.1}
  #allocation0 [shape = 'u32[]', space=smem, size = 0x4, offset = 0x4, fixed_abs, tag = 'smem constant byte address 0x4 - core index']
  #allocation1 [shape = 'u32[144,128]{1,0:T(1,128)}', space=vmem, size = 0x12000, scoped, tag = 'internal scratch']
  #allocation2 [shape = 'f32[128,1]{1,0:T(8,128)}', space=vmem, size = 0x10000, scoped, tag = 'scratch operand']
  %s0 = inlined_call_operand.vmem [shape: f32[128,30], index: 0, kind: input, shape index: {}]
  %s1 = inlined_call_operand.vmem [shape: f32[128,30], index: 1, kind: input, shape index: {}]
  %s2 = inlined_call_operand.vmem [shape: f32[128,1], index: 2, kind: input, shape index: {}]
  %s3 = inlined_call_operand.hbm [shape: f32[1,8,128], index: 3, kind: output, shape index: {}]
  %s4 = sld [smem:[#allocation0]]
  $region30: #{tpu_custom_call.1} parent=0
    _
  %s6 = ssub.s32 1, %s4
  %s7 = scalar_select 0, %s6, %s4
  $region1: #{tpu_custom_call.1} parent=0
    #allocation3 [shape = 'u8[4096]{0}', space=vmem, size = 0x1000, scoped, tag = 'output window, operand 0, single buffered']
    #allocation4 [shape = 's32[1]{0}', space=sflag, size = 0x4, scoped, tag = 'scoped memory for tpu_custom_call.1']
    %8 = vsyncpa [#allocation4], 0
    // Predicated region
    $region2: #{tpu_custom_call.1} parent=1 // pred_check
      _
    $region3: #{tpu_custom_call.1} parent=1 // pred_check_branch
      %10 = sbr.rel (0) target = $region5
    $region4: #{tpu_custom_call.1} parent=1 // pred_region
      %s11 = sadd.s32 0, 0
      %p12 = scmp.lt.s32.totalorder %s11, 0
      %s13 = scalar_select %p12, %s11, 0
      %s14 = smul.u32 16, %s13
      %p15 = scmp.lt.s32.totalorder %s14, 15
      %s16 = scalar_select %p15, %s14, 15
      %s17 = smul.addr %s16, 8
      %s18 = scalar_lea.vmem %s0, %s17
      %s19 = sadd.s32 0, 0
      %p20 = scmp.lt.s32.totalorder %s19, 0
      %s21 = scalar_select %p20, %s19, 0
      %s22 = smul.u32 16, %s21
    $region5: #{tpu_custom_call.1} parent=1 // pred_fallthru
      _
    // Predicated region
    $region6: #{tpu_custom_call.1} parent=1 // pred_check
      _
    $region7: #{tpu_custom_call.1} parent=1 // pred_check_branch
      %24 = sbr.rel (0) target = $region9
    $region8: #{tpu_custom_call.1} parent=1 // pred_region
      %s25 = sadd.s32 0, 0
      %p26 = scmp.lt.s32.totalorder %s25, 0
      %s27 = scalar_select %p26, %s25, 0
      %s28 = smul.u32 16, %s27
      %p29 = scmp.lt.s32.totalorder %s28, 15
      %s30 = scalar_select %p29, %s28, 15
      %s31 = smul.addr %s30, 8
      %s32 = scalar_lea.vmem %s1, %s31
      %s33 = sadd.s32 0, 0
      %p34 = scmp.lt.s32.totalorder %s33, 0
      %s35 = scalar_select %p34, %s33, 0
      %s36 = smul.u32 16, %s35
    $region9: #{tpu_custom_call.1} parent=1 // pred_fallthru
      _
    // Predicated region
    $region10: #{tpu_custom_call.1} parent=1 // pred_check
      _
    $region11: #{tpu_custom_call.1} parent=1 // pred_check_branch
      %38 = sbr.rel (0) target = $region13
    $region12: #{tpu_custom_call.1} parent=1 // pred_region
      %s39 = sadd.s32 0, 0
      %p40 = scmp.lt.s32.totalorder %s39, 0
      %s41 = scalar_select %p40, %s39, 0
      %s42 = smul.u32 16, %s41
      %p43 = scmp.lt.s32.totalorder %s42, 15
      %s44 = scalar_select %p43, %s42, 15
      %s45 = smul.addr %s44, 8
      %s46 = scalar_lea.vmem %s2, %s45
      %s47 = sadd.s32 0, 0
      %p48 = scmp.lt.s32.totalorder %s47, 0
      %s49 = scalar_select %p48, %s47, 0
      %s50 = smul.u32 16, %s49
    $region13: #{tpu_custom_call.1} parent=1 // pred_fallthru
      _
    %s51 = sadd.s32 0, 0
    %p52 = scmp.lt.s32.totalorder %s51, 0
    %s53 = scalar_select %p52, %s51, 0
    %s54 = smul.u32 16, %s53
    %p55 = scmp.lt.s32.totalorder %s54, 15
    %s56 = scalar_select %p55, %s54, 15
    %s57 = smul.addr %s56, 8
    %s58 = scalar_lea.vmem %s0, %s57
    %s59 = sadd.s32 0, 0
    %p60 = scmp.lt.s32.totalorder %s59, 0
    %s61 = scalar_select %p60, %s59, 0
    %s62 = smul.u32 16, %s61
    %p63 = scmp.lt.s32.totalorder %s62, 15
    %s64 = scalar_select %p63, %s62, 15
    %s65 = smul.addr %s64, 8
    %s66 = scalar_lea.vmem %s1, %s65
    %s67 = sadd.s32 0, 0
    %p68 = scmp.lt.s32.totalorder %s67, 0
    %s69 = scalar_select %p68, %s67, 0
    %s70 = smul.u32 16, %s69
    %p71 = scmp.lt.s32.totalorder %s70, 15
    %s72 = scalar_select %p71, %s70, 15
    %s73 = smul.addr %s72, 8
    %s74 = scalar_lea.vmem %s2, %s73
    %s75 = sadd.s32 0, 0
    %p76 = scmp.lt.s32.totalorder %s75, 0
    %s77 = scalar_select %p76, %s75, 0
    %s78 = smul.u32 16, %s77
    %p79 = scmp.lt.s32.totalorder %s78, 15
    %s80 = scalar_select %p79, %s78, 15
    %s81 = smul.addr %s80, 8
    %s82 = scalar_lea.vmem %s0, %s81
    %s83 = sadd.s32 0, 0
    %p84 = scmp.lt.s32.totalorder %s83, 0
    %s85 = scalar_select %p84, %s83, 0
    %s86 = smul.u32 16, %s85
    %s87 = sadd.s32 0, 0
    %p88 = scmp.lt.s32.totalorder %s87, 0
    %s89 = scalar_select %p88, %s87, 0
    %s90 = smul.u32 16, %s89
    %p91 = scmp.lt.s32.totalorder %s90, 15
    %s92 = scalar_select %p91, %s90, 15
    %s93 = smul.addr %s92, 8
    %s94 = scalar_lea.vmem %s1, %s93
    %s95 = sadd.s32 0, 0
    %p96 = scmp.lt.s32.totalorder %s95, 0
    %s97 = scalar_select %p96, %s95, 0
    %s98 = smul.u32 16, %s97
    %s99 = sadd.s32 0, 0
    %p100 = scmp.lt.s32.totalorder %s99, 0
    %s101 = scalar_select %p100, %s99, 0
    %s102 = smul.u32 16, %s101
    %p103 = scmp.lt.s32.totalorder %s102, 15
    %s104 = scalar_select %p103, %s102, 15
    %s105 = smul.addr %s104, 8
    %s106 = scalar_lea.vmem %s2, %s105
    %s107 = sadd.s32 0, 0
    %p108 = scmp.lt.s32.totalorder %s107, 0
    %s109 = scalar_select %p108, %s107, 0
    %s110 = smul.u32 16, %s109
    %p111 = scmp.eq.s32.totalorder 0, 0
    // Predicated region
    $region14: #{tpu_custom_call.1} parent=1 // pred_check
      %p112 = pneg %p111
    $region15: #{tpu_custom_call.1} parent=1 // pred_check_branch
      %114 = sbr.rel (%p112) target = $region17
    $region16: #{tpu_custom_call.1} parent=1 // pred_region
      %vm115 = vcmask 7168
      %116 = vst.msk [vmem:[#allocation2] sm:$0xff] %vm115, 0.0
      %117 = vst.msk [vmem:[#allocation2 + $0x8] sm:$0xff] %vm115, 0.0
      %118 = vst.msk [vmem:[#allocation2 + $0x10] sm:$0xff] %vm115, 0.0
      %119 = vst.msk [vmem:[#allocation2 + $0x18] sm:$0xff] %vm115, 0.0
      %120 = vst.msk [vmem:[#allocation2 + $0x20] sm:$0xff] %vm115, 0.0
      %121 = vst.msk [vmem:[#allocation2 + $0x28] sm:$0xff] %vm115, 0.0
      %122 = vst.msk [vmem:[#allocation2 + $0x30] sm:$0xff] %vm115, 0.0
      %123 = vst.msk [vmem:[#allocation2 + $0x38] sm:$0xff] %vm115, 0.0
      %124 = vst.msk [vmem:[#allocation2 + $0x40] sm:$0xff] %vm115, 0.0
      %125 = vst.msk [vmem:[#allocation2 + $0x48] sm:$0xff] %vm115, 0.0
      %126 = vst.msk [vmem:[#allocation2 + $0x50] sm:$0xff] %vm115, 0.0
      %127 = vst.msk [vmem:[#allocation2 + $0x58] sm:$0xff] %vm115, 0.0
      %128 = vst.msk [vmem:[#allocation2 + $0x60] sm:$0xff] %vm115, 0.0
      %129 = vst.msk [vmem:[#allocation2 + $0x68] sm:$0xff] %vm115, 0.0
      %130 = vst.msk [vmem:[#allocation2 + $0x70] sm:$0xff] %vm115, 0.0
      %131 = vst.msk [vmem:[#allocation2 + $0x78] sm:$0xff] %vm115, 0.0
    $region17: #{tpu_custom_call.1} parent=1 // pred_fallthru
      _
    %v132 = vld [vmem:[%s82] sm:$0xff]
    %v133 = vld [vmem:[%s82 + $0x8] sm:$0xff]
    %v134 = vld [vmem:[%s82 + $0x10] sm:$0xff]
    %v135 = vld [vmem:[%s82 + $0x18] sm:$0xff]
    %v136 = vld [vmem:[%s82 + $0x20] sm:$0xff]
    %v137 = vld [vmem:[%s82 + $0x28] sm:$0xff]
    %v138 = vld [vmem:[%s82 + $0x30] sm:$0xff]
    %v139 = vld [vmem:[%s82 + $0x38] sm:$0xff]
    %v140 = vld [vmem:[%s82 + $0x40] sm:$0xff]
    %v141 = vld [vmem:[%s82 + $0x48] sm:$0xff]
    %v142 = vld [vmem:[%s82 + $0x50] sm:$0xff]
    %v143 = vld [vmem:[%s82 + $0x58] sm:$0xff]
    %v144 = vld [vmem:[%s82 + $0x60] sm:$0xff]
    %v145 = vld [vmem:[%s82 + $0x68] sm:$0xff]
    %v146 = vld [vmem:[%s82 + $0x70] sm:$0xff]
    %v147 = vld [vmem:[%s82 + $0x78] sm:$0xff]
    %v148 = vld [vmem:[%s94] sm:$0xff]
    %v149 = vld [vmem:[%s94 + $0x8] sm:$0xff]
    %v150 = vld [vmem:[%s94 + $0x10] sm:$0xff]
    %v151 = vld [vmem:[%s94 + $0x18] sm:$0xff]
    %v152 = vld [vmem:[%s94 + $0x20] sm:$0xff]
    %v153 = vld [vmem:[%s94 + $0x28] sm:$0xff]
    %v154 = vld [vmem:[%s94 + $0x30] sm:$0xff]
    %v155 = vld [vmem:[%s94 + $0x38] sm:$0xff]
    %v156 = vld [vmem:[%s94 + $0x40] sm:$0xff]
    %v157 = vld [vmem:[%s94 + $0x48] sm:$0xff]
    %v158 = vld [vmem:[%s94 + $0x50] sm:$0xff]
    %v159 = vld [vmem:[%s94 + $0x58] sm:$0xff]
    %v160 = vld [vmem:[%s94 + $0x60] sm:$0xff]
    %v161 = vld [vmem:[%s94 + $0x68] sm:$0xff]
    %v162 = vld [vmem:[%s94 + $0x70] sm:$0xff]
    %v163 = vld [vmem:[%s94 + $0x78] sm:$0xff]
    %v164 = vsub.f32 %v132, %v148
    %v165 = vsub.f32 %v133, %v149
    %v166 = vsub.f32 %v134, %v150
    %v167 = vsub.f32 %v135, %v151
    %v168 = vsub.f32 %v136, %v152
    %v169 = vsub.f32 %v137, %v153
    %v170 = vsub.f32 %v138, %v154
    %v171 = vsub.f32 %v139, %v155
    %v172 = vsub.f32 %v140, %v156
    %v173 = vsub.f32 %v141, %v157
    %v174 = vsub.f32 %v142, %v158
    %v175 = vsub.f32 %v143, %v159
    %v176 = vsub.f32 %v144, %v160
    %v177 = vsub.f32 %v145, %v161
    %v178 = vsub.f32 %v146, %v162
    %v179 = vsub.f32 %v147, %v163
    %v180 = vadd.f32 %v164, 1e-06
    %v181 = vadd.f32 %v165, 1e-06
    %v182 = vadd.f32 %v166, 1e-06
    %v183 = vadd.f32 %v167, 1e-06
    %v184 = vadd.f32 %v168, 1e-06
    %v185 = vadd.f32 %v169, 1e-06
    %v186 = vadd.f32 %v170, 1e-06
    %v187 = vadd.f32 %v171, 1e-06
    %v188 = vadd.f32 %v172, 1e-06
    %v189 = vadd.f32 %v173, 1e-06
    %v190 = vadd.f32 %v174, 1e-06
    %v191 = vadd.f32 %v175, 1e-06
    %v192 = vadd.f32 %v176, 1e-06
    %v193 = vadd.f32 %v177, 1e-06
    %v194 = vadd.f32 %v178, 1e-06
    %v195 = vadd.f32 %v179, 1e-06
    %v196 = vmul.f32 %v180, %v180
    %v197 = vmul.f32 %v181, %v181
    %v198 = vmul.f32 %v182, %v182
    %v199 = vmul.f32 %v183, %v183
    %v200 = vmul.f32 %v184, %v184
    %v201 = vmul.f32 %v185, %v185
    %v202 = vmul.f32 %v186, %v186
    %v203 = vmul.f32 %v187, %v187
    %v204 = vmul.f32 %v188, %v188
    %v205 = vmul.f32 %v189, %v189
    %v206 = vmul.f32 %v190, %v190
    %v207 = vmul.f32 %v191, %v191
    %v208 = vmul.f32 %v192, %v192
    %v209 = vmul.f32 %v193, %v193
    %v210 = vmul.f32 %v194, %v194
    %v211 = vmul.f32 %v195, %v195
    %vm212 = vcmask 244736
    %v213 = vsel %vm212, %v196, 0.0
    %214 = vadd.xlane.f32.xlu0 %v213
    %v215 = vpop.xlane.xlu0 %214
    %v216 = vsel %vm212, %v197, 0.0
    %217 = vadd.xlane.f32.xlu0 %v216
    %v218 = vpop.xlane.xlu0 %217
    %v219 = vsel %vm212, %v198, 0.0
    %220 = vadd.xlane.f32.xlu0 %v219
    %v221 = vpop.xlane.xlu0 %220
    %v222 = vsel %vm212, %v199, 0.0
    %223 = vadd.xlane.f32.xlu0 %v222
    %v224 = vpop.xlane.xlu0 %223
    %v225 = vsel %vm212, %v200, 0.0
    %226 = vadd.xlane.f32.xlu0 %v225
    %v227 = vpop.xlane.xlu0 %226
    %v228 = vsel %vm212, %v201, 0.0
    %229 = vadd.xlane.f32.xlu0 %v228
    %v230 = vpop.xlane.xlu0 %229
    %v231 = vsel %vm212, %v202, 0.0
    %232 = vadd.xlane.f32.xlu0 %v231
    %v233 = vpop.xlane.xlu0 %232
    %v234 = vsel %vm212, %v203, 0.0
    %235 = vadd.xlane.f32.xlu0 %v234
    %v236 = vpop.xlane.xlu0 %235
    %v237 = vsel %vm212, %v204, 0.0
    %238 = vadd.xlane.f32.xlu0 %v237
    %v239 = vpop.xlane.xlu0 %238
    %v240 = vsel %vm212, %v205, 0.0
    %241 = vadd.xlane.f32.xlu0 %v240
    %v242 = vpop.xlane.xlu0 %241
    %v243 = vsel %vm212, %v206, 0.0
    %244 = vadd.xlane.f32.xlu0 %v243
    %v245 = vpop.xlane.xlu0 %244
    %v246 = vsel %vm212, %v207, 0.0
    %247 = vadd.xlane.f32.xlu0 %v246
    %v248 = vpop.xlane.xlu0 %247
    %v249 = vsel %vm212, %v208, 0.0
    %250 = vadd.xlane.f32.xlu0 %v249
    %v251 = vpop.xlane.xlu0 %250
    %v252 = vsel %vm212, %v209, 0.0
    %253 = vadd.xlane.f32.xlu0 %v252
    %v254 = vpop.xlane.xlu0 %253
    %v255 = vsel %vm212, %v210, 0.0
    %256 = vadd.xlane.f32.xlu0 %v255
    %v257 = vpop.xlane.xlu0 %256
    %v258 = vsel %vm212, %v211, 0.0
    %259 = vadd.xlane.f32.xlu0 %v258
    %v260 = vpop.xlane.xlu0 %259
    %s261 = sadd.s32 0, 0
    %s262 = smul.u32 %s261, 128
    %v263 = vlaneseq
    %v264 = vshrl.u32 %v263, 7
    %v265 = vadd.s32 %v264, 8
    %v266 = vadd.s32 %v264, 16
    %v267 = vadd.s32 %v264, 24
    %v268 = vadd.s32 %v264, 32
    %v269 = vadd.s32 %v264, 40
    %v270 = vadd.s32 %v264, 48
    %v271 = vadd.s32 %v264, 56
    %v272 = vadd.s32 %v264, 64
    %v273 = vadd.s32 %v264, 72
    %v274 = vadd.s32 %v264, 80
    %v275 = vadd.s32 %v264, 88
    %v276 = vadd.s32 %v264, 96
    %v277 = vadd.s32 %v264, 104
    %v278 = vadd.s32 %v264, 112
    %v279 = vadd.s32 %v264, 120
    %v280 = vstv %s262
    %v281 = vadd.s32 %v280, %v264
    %v282 = vadd.s32 %v280, %v265
    %v283 = vadd.s32 %v280, %v266
    %v284 = vadd.s32 %v280, %v267
    %v285 = vadd.s32 %v280, %v268
    %v286 = vadd.s32 %v280, %v269
    %v287 = vadd.s32 %v280, %v270
    %v288 = vadd.s32 %v280, %v271
    %v289 = vadd.s32 %v280, %v272
    %v290 = vadd.s32 %v280, %v273
    %v291 = vadd.s32 %v280, %v274
    %v292 = vadd.s32 %v280, %v275
    %v293 = vadd.s32 %v280, %v276
    %v294 = vadd.s32 %v280, %v277
    %v295 = vadd.s32 %v280, %v278
    %v296 = vadd.s32 %v280, %v279
    %vm297 = vcmp.lt.s32.totalorder %v281, 128
    %vm298 = vcmp.lt.s32.totalorder %v282, 128
    %vm299 = vcmp.lt.s32.totalorder %v283, 128
    %vm300 = vcmp.lt.s32.totalorder %v284, 128
    %vm301 = vcmp.lt.s32.totalorder %v285, 128
    %vm302 = vcmp.lt.s32.totalorder %v286, 128
    %vm303 = vcmp.lt.s32.totalorder %v287, 128
    %vm304 = vcmp.lt.s32.totalorder %v288, 128
    %vm305 = vcmp.lt.s32.totalorder %v289, 128
    %vm306 = vcmp.lt.s32.totalorder %v290, 128
    %vm307 = vcmp.lt.s32.totalorder %v291, 128
    %vm308 = vcmp.lt.s32.totalorder %v292, 128
    %vm309 = vcmp.lt.s32.totalorder %v293, 128
    %vm310 = vcmp.lt.s32.totalorder %v294, 128
    %vm311 = vcmp.lt.s32.totalorder %v295, 128
    %vm312 = vcmp.lt.s32.totalorder %v296, 128
    %v313 = vsel %vm297, %v215, 0.0
    %v314 = vsel %vm298, %v218, 0.0
    %v315 = vsel %vm299, %v221, 0.0
    %v316 = vsel %vm300, %v224, 0.0
    %v317 = vsel %vm301, %v227, 0.0
    %v318 = vsel %vm302, %v230, 0.0
    %v319 = vsel %vm303, %v233, 0.0
    %v320 = vsel %vm304, %v236, 0.0
    %v321 = vsel %vm305, %v239, 0.0
    %v322 = vsel %vm306, %v242, 0.0
    %v323 = vsel %vm307, %v245, 0.0
    %v324 = vsel %vm308, %v248, 0.0
    %v325 = vsel %vm309, %v251, 0.0
    %v326 = vsel %vm310, %v254, 0.0
    %v327 = vsel %vm311, %v257, 0.0
    %v328 = vsel %vm312, %v260, 0.0
    %v329 = vld [vmem:[%s106] sm:$0xff]
    %v330 = vld [vmem:[%s106 + $0x8] sm:$0xff]
    %v331 = vld [vmem:[%s106 + $0x10] sm:$0xff]
    %v332 = vld [vmem:[%s106 + $0x18] sm:$0xff]
    %v333 = vld [vmem:[%s106 + $0x20] sm:$0xff]
    %v334 = vld [vmem:[%s106 + $0x28] sm:$0xff]
    %v335 = vld [vmem:[%s106 + $0x30] sm:$0xff]
    %v336 = vld [vmem:[%s106 + $0x38] sm:$0xff]
    %v337 = vld [vmem:[%s106 + $0x40] sm:$0xff]
    %v338 = vld [vmem:[%s106 + $0x48] sm:$0xff]
    %v339 = vld [vmem:[%s106 + $0x50] sm:$0xff]
    %v340 = vld [vmem:[%s106 + $0x58] sm:$0xff]
    %v341 = vld [vmem:[%s106 + $0x60] sm:$0xff]
    %v342 = vld [vmem:[%s106 + $0x68] sm:$0xff]
    %v343 = vld [vmem:[%s106 + $0x70] sm:$0xff]
    %v344 = vld [vmem:[%s106 + $0x78] sm:$0xff]
    %v345 = vsel %vm297, %v329, 0.0
    %v346 = vsel %vm298, %v330, 0.0
    %v347 = vsel %vm299, %v331, 0.0
    %v348 = vsel %vm300, %v332, 0.0
    %v349 = vsel %vm301, %v333, 0.0
    %v350 = vsel %vm302, %v334, 0.0
    %v351 = vsel %vm303, %v335, 0.0
    %v352 = vsel %vm304, %v336, 0.0
    %v353 = vsel %vm305, %v337, 0.0
    %v354 = vsel %vm306, %v338, 0.0
    %v355 = vsel %vm307, %v339, 0.0
    %v356 = vsel %vm308, %v340, 0.0
    %v357 = vsel %vm309, %v341, 0.0
    %v358 = vsel %vm310, %v342, 0.0
    %v359 = vsel %vm311, %v343, 0.0
    %v360 = vsel %vm312, %v344, 0.0
    %v361 = vrsqrt.pop %v313
    %v362 = vmul.f32 %v313, %v361
    %vm363 = vcmp.eq.f32.partialorder %v313, inf
    %v364 = vsel %vm363, %v313, %v362
    %vm365 = vcmp.eq.f32.partialorder %v313, 0.0
    %v366 = vand.u32 %v313, 2147483648
    %v367 = vsel %vm365, %v366, %v364
    %v368 = vrsqrt.pop %v314
    %v369 = vmul.f32 %v314, %v368
    %vm370 = vcmp.eq.f32.partialorder %v314, inf
    %v371 = vsel %vm370, %v314, %v369
    %vm372 = vcmp.eq.f32.partialorder %v314, 0.0
    %v373 = vand.u32 %v314, 2147483648
    %v374 = vsel %vm372, %v373, %v371
    %v375 = vrsqrt.pop %v315
    %v376 = vmul.f32 %v315, %v375
    %vm377 = vcmp.eq.f32.partialorder %v315, inf
    %v378 = vsel %vm377, %v315, %v376
    %vm379 = vcmp.eq.f32.partialorder %v315, 0.0
    %v380 = vand.u32 %v315, 2147483648
    %v381 = vsel %vm379, %v380, %v378
    %v382 = vrsqrt.pop %v316
    %v383 = vmul.f32 %v316, %v382
    %vm384 = vcmp.eq.f32.partialorder %v316, inf
    %v385 = vsel %vm384, %v316, %v383
    %vm386 = vcmp.eq.f32.partialorder %v316, 0.0
    %v387 = vand.u32 %v316, 2147483648
    %v388 = vsel %vm386, %v387, %v385
    %v389 = vrsqrt.pop %v317
    %v390 = vmul.f32 %v317, %v389
    %vm391 = vcmp.eq.f32.partialorder %v317, inf
    %v392 = vsel %vm391, %v317, %v390
    %vm393 = vcmp.eq.f32.partialorder %v317, 0.0
    %v394 = vand.u32 %v317, 2147483648
    %v395 = vsel %vm393, %v394, %v392
    %v396 = vrsqrt.pop %v318
    %v397 = vmul.f32 %v318, %v396
    %vm398 = vcmp.eq.f32.partialorder %v318, inf
    %v399 = vsel %vm398, %v318, %v397
    %vm400 = vcmp.eq.f32.partialorder %v318, 0.0
    %v401 = vand.u32 %v318, 2147483648
    %v402 = vsel %vm400, %v401, %v399
    %v403 = vrsqrt.pop %v319
    %v404 = vmul.f32 %v319, %v403
    %vm405 = vcmp.eq.f32.partialorder %v319, inf
    %v406 = vsel %vm405, %v319, %v404
    %vm407 = vcmp.eq.f32.partialorder %v319, 0.0
    %v408 = vand.u32 %v319, 2147483648
    %v409 = vsel %vm407, %v408, %v406
    %v410 = vrsqrt.pop %v320
    %v411 = vmul.f32 %v320, %v410
    %vm412 = vcmp.eq.f32.partialorder %v320, inf
    %v413 = vsel %vm412, %v320, %v411
    %vm414 = vcmp.eq.f32.partialorder %v320, 0.0
    %v415 = vand.u32 %v320, 2147483648
    %v416 = vsel %vm414, %v415, %v413
    %v417 = vrsqrt.pop %v321
    %v418 = vmul.f32 %v321, %v417
    %vm419 = vcmp.eq.f32.partialorder %v321, inf
    %v420 = vsel %vm419, %v321, %v418
    %vm421 = vcmp.eq.f32.partialorder %v321, 0.0
    %v422 = vand.u32 %v321, 2147483648
    %v423 = vsel %vm421, %v422, %v420
    %v424 = vrsqrt.pop %v322
    %v425 = vmul.f32 %v322, %v424
    %vm426 = vcmp.eq.f32.partialorder %v322, inf
    %v427 = vsel %vm426, %v322, %v425
    %vm428 = vcmp.eq.f32.partialorder %v322, 0.0
    %v429 = vand.u32 %v322, 2147483648
    %v430 = vsel %vm428, %v429, %v427
    %v431 = vrsqrt.pop %v323
    %v432 = vmul.f32 %v323, %v431
    %vm433 = vcmp.eq.f32.partialorder %v323, inf
    %v434 = vsel %vm433, %v323, %v432
    %vm435 = vcmp.eq.f32.partialorder %v323, 0.0
    %v436 = vand.u32 %v323, 2147483648
    %v437 = vsel %vm435, %v436, %v434
    %v438 = vrsqrt.pop %v324
    %v439 = vmul.f32 %v324, %v438
    %vm440 = vcmp.eq.f32.partialorder %v324, inf
    %v441 = vsel %vm440, %v324, %v439
    %vm442 = vcmp.eq.f32.partialorder %v324, 0.0
    %v443 = vand.u32 %v324, 2147483648
    %v444 = vsel %vm442, %v443, %v441
    %v445 = vrsqrt.pop %v325
    %v446 = vmul.f32 %v325, %v445
    %vm447 = vcmp.eq.f32.partialorder %v325, inf
    %v448 = vsel %vm447, %v325, %v446
    %vm449 = vcmp.eq.f32.partialorder %v325, 0.0
    %v450 = vand.u32 %v325, 2147483648
    %v451 = vsel %vm449, %v450, %v448
    %v452 = vrsqrt.pop %v326
    %v453 = vmul.f32 %v326, %v452
    %vm454 = vcmp.eq.f32.partialorder %v326, inf
    %v455 = vsel %vm454, %v326, %v453
    %vm456 = vcmp.eq.f32.partialorder %v326, 0.0
    %v457 = vand.u32 %v326, 2147483648
    %v458 = vsel %vm456, %v457, %v455
    %v459 = vrsqrt.pop %v327
    %v460 = vmul.f32 %v327, %v459
    %vm461 = vcmp.eq.f32.partialorder %v327, inf
    %v462 = vsel %vm461, %v327, %v460
    %vm463 = vcmp.eq.f32.partialorder %v327, 0.0
    %v464 = vand.u32 %v327, 2147483648
    %v465 = vsel %vm463, %v464, %v462
    %v466 = vrsqrt.pop %v328
    %v467 = vmul.f32 %v328, %v466
    %vm468 = vcmp.eq.f32.partialorder %v328, inf
    %v469 = vsel %vm468, %v328, %v467
    %vm470 = vcmp.eq.f32.partialorder %v328, 0.0
    %v471 = vand.u32 %v328, 2147483648
    %v472 = vsel %vm470, %v471, %v469
    %v473 = vsub.f32 1.0, %v367
    %v474 = vsub.f32 1.0, %v374
    %v475 = vsub.f32 1.0, %v381
    %v476 = vsub.f32 1.0, %v388
    %v477 = vsub.f32 1.0, %v395
    %v478 = vsub.f32 1.0, %v402
    %v479 = vsub.f32 1.0, %v409
    %v480 = vsub.f32 1.0, %v416
    %v481 = vsub.f32 1.0, %v423
    %v482 = vsub.f32 1.0, %v430
    %v483 = vsub.f32 1.0, %v437
    %v484 = vsub.f32 1.0, %v444
    %v485 = vsub.f32 1.0, %v451
    %v486 = vsub.f32 1.0, %v458
    %v487 = vsub.f32 1.0, %v465
    %v488 = vsub.f32 1.0, %v472
    %v489 = vmax.f32 %v473, 0.0
    %v490 = vmax.f32 %v474, 0.0
    %v491 = vmax.f32 %v475, 0.0
    %v492 = vmax.f32 %v476, 0.0
    %v493 = vmax.f32 %v477, 0.0
    %v494 = vmax.f32 %v478, 0.0
    %v495 = vmax.f32 %v479, 0.0
    %v496 = vmax.f32 %v480, 0.0
    %v497 = vmax.f32 %v481, 0.0
    %v498 = vmax.f32 %v482, 0.0
    %v499 = vmax.f32 %v483, 0.0
    %v500 = vmax.f32 %v484, 0.0
    %v501 = vmax.f32 %v485, 0.0
    %v502 = vmax.f32 %v486, 0.0
    %v503 = vmax.f32 %v487, 0.0
    %v504 = vmax.f32 %v488, 0.0
    %v505 = vsub.f32 1.0, %v345
    %v506 = vsub.f32 1.0, %v346
    %v507 = vsub.f32 1.0, %v347
    %v508 = vsub.f32 1.0, %v348
    %v509 = vsub.f32 1.0, %v349
    %v510 = vsub.f32 1.0, %v350
    %v511 = vsub.f32 1.0, %v351
    %v512 = vsub.f32 1.0, %v352
    %v513 = vsub.f32 1.0, %v353
    %v514 = vsub.f32 1.0, %v354
    %v515 = vsub.f32 1.0, %v355
    %v516 = vsub.f32 1.0, %v356
    %v517 = vsub.f32 1.0, %v357
    %v518 = vsub.f32 1.0, %v358
    %v519 = vsub.f32 1.0, %v359
    %v520 = vsub.f32 1.0, %v360
    %v521 = vmul.f32 %v505, %v313
    %v522 = vmul.f32 %v506, %v314
    %v523 = vmul.f32 %v507, %v315
    %v524 = vmul.f32 %v508, %v316
    %v525 = vmul.f32 %v509, %v317
    %v526 = vmul.f32 %v510, %v318
    %v527 = vmul.f32 %v511, %v319
    %v528 = vmul.f32 %v512, %v320
    %v529 = vmul.f32 %v513, %v321
    %v530 = vmul.f32 %v514, %v322
    %v531 = vmul.f32 %v515, %v323
    %v532 = vmul.f32 %v516, %v324
    %v533 = vmul.f32 %v517, %v325
    %v534 = vmul.f32 %v518, %v326
    %v535 = vmul.f32 %v519, %v327
    %v536 = vmul.f32 %v520, %v328
    %v537 = vmul.f32 %v489, %v489
    %v538 = vmul.f32 %v490, %v490
    %v539 = vmul.f32 %v491, %v491
    %v540 = vmul.f32 %v492, %v492
    %v541 = vmul.f32 %v493, %v493
    %v542 = vmul.f32 %v494, %v494
    %v543 = vmul.f32 %v495, %v495
    %v544 = vmul.f32 %v496, %v496
    %v545 = vmul.f32 %v497, %v497
    %v546 = vmul.f32 %v498, %v498
    %v547 = vmul.f32 %v499, %v499
    %v548 = vmul.f32 %v500, %v500
    %v549 = vmul.f32 %v501, %v501
    %v550 = vmul.f32 %v502, %v502
    %v551 = vmul.f32 %v503, %v503
    %v552 = vmul.f32 %v504, %v504
    %v553 = vmul.f32 %v345, %v537
    %v554 = vmul.f32 %v346, %v538
    %v555 = vmul.f32 %v347, %v539
    %v556 = vmul.f32 %v348, %v540
    %v557 = vmul.f32 %v349, %v541
    %v558 = vmul.f32 %v350, %v542
    %v559 = vmul.f32 %v351, %v543
    %v560 = vmul.f32 %v352, %v544
    %v561 = vmul.f32 %v353, %v545
    %v562 = vmul.f32 %v354, %v546
    %v563 = vmul.f32 %v355, %v547
    %v564 = vmul.f32 %v356, %v548
    %v565 = vmul.f32 %v357, %v549
    %v566 = vmul.f32 %v358, %v550
    %v567 = vmul.f32 %v359, %v551
    %v568 = vmul.f32 %v360, %v552
    %v569 = vadd.f32 %v521, %v553
    %v570 = vadd.f32 %v522, %v554
    %v571 = vadd.f32 %v523, %v555
    %v572 = vadd.f32 %v524, %v556
    %v573 = vadd.f32 %v525, %v557
    %v574 = vadd.f32 %v526, %v558
    %v575 = vadd.f32 %v527, %v559
    %v576 = vadd.f32 %v528, %v560
    %v577 = vadd.f32 %v529, %v561
    %v578 = vadd.f32 %v530, %v562
    %v579 = vadd.f32 %v531, %v563
    %v580 = vadd.f32 %v532, %v564
    %v581 = vadd.f32 %v533, %v565
    %v582 = vadd.f32 %v534, %v566
    %v583 = vadd.f32 %v535, %v567
    %v584 = vadd.f32 %v536, %v568
    %v585 = vld [vmem:[#allocation2] sm:$0xff]
    %v586 = vld [vmem:[#allocation2 + $0x8] sm:$0xff]
    %v587 = vld [vmem:[#allocation2 + $0x10] sm:$0xff]
    %v588 = vld [vmem:[#allocation2 + $0x18] sm:$0xff]
    %v589 = vld [vmem:[#allocation2 + $0x20] sm:$0xff]
    %v590 = vld [vmem:[#allocation2 + $0x28] sm:$0xff]
    %v591 = vld [vmem:[#allocation2 + $0x30] sm:$0xff]
    %v592 = vld [vmem:[#allocation2 + $0x38] sm:$0xff]
    %v593 = vld [vmem:[#allocation2 + $0x40] sm:$0xff]
    %v594 = vld [vmem:[#allocation2 + $0x48] sm:$0xff]
    %v595 = vld [vmem:[#allocation2 + $0x50] sm:$0xff]
    %v596 = vld [vmem:[#allocation2 + $0x58] sm:$0xff]
    %v597 = vld [vmem:[#allocation2 + $0x60] sm:$0xff]
    %v598 = vld [vmem:[#allocation2 + $0x68] sm:$0xff]
    %v599 = vld [vmem:[#allocation2 + $0x70] sm:$0xff]
    %v600 = vld [vmem:[#allocation2 + $0x78] sm:$0xff]
    %v601 = vadd.f32 %v585, %v569
    %v602 = vadd.f32 %v586, %v570
    %v603 = vadd.f32 %v587, %v571
    %v604 = vadd.f32 %v588, %v572
    %v605 = vadd.f32 %v589, %v573
    %v606 = vadd.f32 %v590, %v574
    %v607 = vadd.f32 %v591, %v575
    %v608 = vadd.f32 %v592, %v576
    %v609 = vadd.f32 %v593, %v577
    %v610 = vadd.f32 %v594, %v578
    %v611 = vadd.f32 %v595, %v579
    %v612 = vadd.f32 %v596, %v580
    %v613 = vadd.f32 %v597, %v581
    %v614 = vadd.f32 %v598, %v582
    %v615 = vadd.f32 %v599, %v583
    %v616 = vadd.f32 %v600, %v584
    %vm617 = vcmask 7168
    %618 = vst.msk [vmem:[#allocation2] sm:$0xff] %vm617, %v601
    %619 = vst.msk [vmem:[#allocation2 + $0x8] sm:$0xff] %vm617, %v602
    %620 = vst.msk [vmem:[#allocation2 + $0x10] sm:$0xff] %vm617, %v603
    %621 = vst.msk [vmem:[#allocation2 + $0x18] sm:$0xff] %vm617, %v604
    %622 = vst.msk [vmem:[#allocation2 + $0x20] sm:$0xff] %vm617, %v605
    %623 = vst.msk [vmem:[#allocation2 + $0x28] sm:$0xff] %vm617, %v606
    %624 = vst.msk [vmem:[#allocation2 + $0x30] sm:$0xff] %vm617, %v607
    %625 = vst.msk [vmem:[#allocation2 + $0x38] sm:$0xff] %vm617, %v608
    %626 = vst.msk [vmem:[#allocation2 + $0x40] sm:$0xff] %vm617, %v609
    %627 = vst.msk [vmem:[#allocation2 + $0x48] sm:$0xff] %vm617, %v610
    %628 = vst.msk [vmem:[#allocation2 + $0x50] sm:$0xff] %vm617, %v611
    %629 = vst.msk [vmem:[#allocation2 + $0x58] sm:$0xff] %vm617, %v612
    %630 = vst.msk [vmem:[#allocation2 + $0x60] sm:$0xff] %vm617, %v613
    %631 = vst.msk [vmem:[#allocation2 + $0x68] sm:$0xff] %vm617, %v614
    %632 = vst.msk [vmem:[#allocation2 + $0x70] sm:$0xff] %vm617, %v615
    %633 = vst.msk [vmem:[#allocation2 + $0x78] sm:$0xff] %vm617, %v616
    // Predicated region
    $region18: #{tpu_custom_call.1} parent=1 // pred_check
      %p634 = pneg %p111
    $region19: #{tpu_custom_call.1} parent=1 // pred_check_branch
      %636 = sbr.rel (%p634) target = $region21
    $region20: #{tpu_custom_call.1} parent=1 // pred_region
      %v637 = vld [vmem:[#allocation2] sm:$0xff]
      %v638 = vld [vmem:[#allocation2 + $0x8] sm:$0xff]
      %v639 = vld [vmem:[#allocation2 + $0x10] sm:$0xff]
      %v640 = vld [vmem:[#allocation2 + $0x18] sm:$0xff]
      %v641 = vld [vmem:[#allocation2 + $0x20] sm:$0xff]
      %v642 = vld [vmem:[#allocation2 + $0x28] sm:$0xff]
      %v643 = vld [vmem:[#allocation2 + $0x30] sm:$0xff]
      %v644 = vld [vmem:[#allocation2 + $0x38] sm:$0xff]
      %v645 = vld [vmem:[#allocation2 + $0x40] sm:$0xff]
      %v646 = vld [vmem:[#allocation2 + $0x48] sm:$0xff]
      %v647 = vld [vmem:[#allocation2 + $0x50] sm:$0xff]
      %v648 = vld [vmem:[#allocation2 + $0x58] sm:$0xff]
      %v649 = vld [vmem:[#allocation2 + $0x60] sm:$0xff]
      %v650 = vld [vmem:[#allocation2 + $0x68] sm:$0xff]
      %v651 = vld [vmem:[#allocation2 + $0x70] sm:$0xff]
      %v652 = vld [vmem:[#allocation2 + $0x78] sm:$0xff]
      %v653 = vsel %vm617, %v637, 0.0
      %v654 = vsel %vm617, %v638, 0.0
      %v655 = vadd.f32 %v653, %v654
      %v656 = vsel %vm617, %v639, 0.0
      %v657 = vadd.f32 %v655, %v656
      %v658 = vsel %vm617, %v640, 0.0
      %v659 = vadd.f32 %v657, %v658
      %v660 = vsel %vm617, %v641, 0.0
      %v661 = vadd.f32 %v659, %v660
      %v662 = vsel %vm617, %v642, 0.0
      %v663 = vadd.f32 %v661, %v662
      %v664 = vsel %vm617, %v643, 0.0
      %v665 = vadd.f32 %v663, %v664
      %v666 = vsel %vm617, %v644, 0.0
      %v667 = vadd.f32 %v665, %v666
      %v668 = vsel %vm617, %v645, 0.0
      %v669 = vadd.f32 %v667, %v668
      %v670 = vsel %vm617, %v646, 0.0
      %v671 = vadd.f32 %v669, %v670
      %v672 = vsel %vm617, %v647, 0.0
      %v673 = vadd.f32 %v671, %v672
      %v674 = vsel %vm617, %v648, 0.0
      %v675 = vadd.f32 %v673, %v674
      %v676 = vsel %vm617, %v649, 0.0
      %v677 = vadd.f32 %v675, %v676
      %v678 = vsel %vm617, %v650, 0.0
      %v679 = vadd.f32 %v677, %v678
      %v680 = vsel %vm617, %v651, 0.0
      %v681 = vadd.f32 %v679, %v680
      %v682 = vsel %vm617, %v652, 0.0
      %v683 = vadd.f32 %v681, %v682
      %684 = vadd.xlane.f32.xlu0 %v683
      %v685 = vpop.xlane.xlu0 %684
      %v686 = vrot.slane %v685, 4
      %v687 = vadd.f32 %v685, %v686
      %v688 = vrot.slane %v687, 2
      %v689 = vadd.f32 %v687, %v688
      %v690 = vrot.slane %v689, 1
      %v691 = vadd.f32 %v689, %v690
      %s692 = vtos %v691
      %v693 = vstv %s692
      %694 = vst [vmem:[#allocation3] sm:$0xff] %v693
    $region21: #{tpu_custom_call.1} parent=1 // pred_fallthru
      _
    // Predicated region
    $region22: #{tpu_custom_call.1} parent=1 // pred_check
      _
    $region23: #{tpu_custom_call.1} parent=1 // pred_check_branch
      %696 = sbr.rel (0) target = $region25
    $region24: #{tpu_custom_call.1} parent=1 // pred_region
      %s698 = ssub.s32 128, 128
      %699 = vsyncadd [#allocation4], %s698
      %s701 = sshll.u32 [#allocation3], 4
      %s702 = int_to_ptr.vmem [resolvable:$true] %s701
      %704 = dma.vmem_to_hbm [thread:$0]  %s702, 128, %s3, [#allocation4]
    $region25: #{tpu_custom_call.1} parent=1 // pred_fallthru
      _
    // Predicated region
    $region26: #{tpu_custom_call.1} parent=1 // pred_check
      _
    $region27: #{tpu_custom_call.1} parent=1 // pred_check_branch
      %706 = sbr.rel (0) target = $region29
    $region28: #{tpu_custom_call.1} parent=1 // pred_region
      %707 = dma.done [#allocation4], 128
    $region29: #{tpu_custom_call.1} parent=1 // pred_fallthru
      _
    %708 = vsyncpa [#allocation4], 1

</llo_original>
